<compile_context>
chip_gen: v7x
topology: tpu7x:2x2x1
jax: 0.10.0
libtpu: 0.0.40
codegen_flags: <defaults>
</compile_context>

<pallas_src>
import jax
import jax.numpy as jnp
from jax.experimental import pallas as pl
from jax.experimental.pallas import tpu as pltpu

LANE = 128     # TPU lane width (last-dim tile)
SUBLANE = 8    # f32 sublane tile


def _round_up(n, m):
    return ((n + m - 1) // m) * m


def mlp_kernel(x_ref, w1_ref, b1_ref, w2_ref, b2_ref, w3_ref, b3_ref, o_ref):
    # Layer 1: Linear (bf16 MXU operands, f32 accumulate) + bias + ReLU (f32 VPU).
    h1 = jnp.dot(x_ref[...], w1_ref[...], preferred_element_type=jnp.float32)
    h1 = jnp.maximum(h1 + b1_ref[...], 0.0)
    # Dropout(p=0.3) -> identity in eval mode.
    # Layer 2: Linear + bias + ReLU.
    h2 = jnp.dot(h1.astype(jnp.bfloat16), w2_ref[...],
                 preferred_element_type=jnp.float32)
    h2 = jnp.maximum(h2 + b2_ref[...], 0.0)
    # Dropout(p=0.3) -> identity in eval mode.
    # Output layer: Linear (logits). w3 is column-padded to 128 in VMEM for a
    # full MXU pass; slice back to the true class count before the store.
    logits_pad = jnp.dot(h2.astype(jnp.bfloat16), w3_ref[...],
                         preferred_element_type=jnp.float32)
    nc = o_ref.shape[-1]
    o_ref[...] = (logits_pad[:, :nc] + b3_ref[...]).astype(o_ref.dtype)


def prepare_params(params):
    """One-time weight prep (hoisted out of the forward pass).

    params: w_i of shape (in, out), b_i of shape (1, out), f32
            (PyTorch nn.Linear weights transposed once outside the kernel).
    Returns bf16 weights (w3 column-padded to a lane multiple) + f32 biases.
    """
    num_classes = params["w3"].shape[1]
    c_pad = _round_up(num_classes, LANE)
    w3_p = jnp.zeros((params["w3"].shape[0], c_pad), jnp.bfloat16)
    w3_p = w3_p.at[:, :num_classes].set(params["w3"].astype(jnp.bfloat16))
    return {
        "w1": params["w1"].astype(jnp.bfloat16),
        "b1": params["b1"].astype(jnp.float32).reshape(1, -1),
        "w2": params["w2"].astype(jnp.bfloat16),
        "b2": params["b2"].astype(jnp.float32).reshape(1, -1),
        "w3": w3_p,
        "b3": params["b3"].astype(jnp.float32).reshape(1, -1),  # unpadded (1, C)
    }


def fcnn_forward(x, prep, *, tile_b=2048, vmem_limit_bytes=None):
    """Eval-mode forward of FCNNModel.

    x: (B, input_dim) f32.  prep: output of prepare_params().
    tile_b: batch tile. Production: 2048-4096 (pick a divisor of B to avoid
            round-up waste).  v5e: cap ~2048 at the default scoped-VMEM limit
            or pass vmem_limit_bytes≈28<<20 for 4096.  v6e: 4096 fits the
            32 MiB default.  v7x: 4096 fits; don't copy v6e 8192 configs
            blindly (64 MiB physical VMEM per TC).
    """
    w1, b1 = prep["w1"], prep["b1"]
    w2, b2 = prep["w2"], prep["b2"]
    w3, b3 = prep["w3"], prep["b3"]

    B, in_dim = x.shape
    h1_dim, h2_dim = w1.shape[1], w2.shape[1]
    c_pad = w3.shape[1]
    num_classes = b3.shape[1]

    # Clamp the tile to the (sublane-rounded) batch so small batches don't pay
    # a full tile of padded compute/DMA; pad batch only as far as needed.
    tile_b = max(SUBLANE, min(tile_b, _round_up(B, SUBLANE)))
    b_pad = _round_up(B, tile_b)

    x_bf = x.astype(jnp.bfloat16)
    if b_pad != B:
        x_bf = jnp.zeros((b_pad, in_dim), jnp.bfloat16).at[:B, :].set(x_bf)

    grid = (b_pad // tile_b,)

    def resident(arr):
        # Same block every grid step -> DMA'd once, single-buffered,
        # VMEM-resident across the whole grid.
        return pl.BlockSpec(arr.shape, lambda i: (0, 0),
                            pipeline_mode=pl.Buffered(1))

    flops = 2 * b_pad * (in_dim * h1_dim + h1_dim * h2_dim + h2_dim * c_pad)
    bytes_accessed = (
        b_pad * in_dim * 2                                   # x (bf16, unpadded K)
        + (w1.size + w2.size + w3.size) * 2                  # bf16 weights
        + (b1.size + b2.size + b3.size) * 4                  # f32 biases
        + b_pad * num_classes * 4)                           # narrow f32 logits

    out = pl.pallas_call(
        mlp_kernel,
        out_shape=jax.ShapeDtypeStruct((b_pad, num_classes), jnp.float32),
        grid=grid,
        in_specs=[
            pl.BlockSpec((tile_b, in_dim), lambda i: (i, 0)),   # batch-tiled x
            resident(w1), resident(b1),
            resident(w2), resident(b2),
            resident(w3), resident(b3),
        ],
        out_specs=pl.BlockSpec((tile_b, num_classes), lambda i: (i, 0)),
        compiler_params=pltpu.CompilerParams(
            dimension_semantics=("parallel",),
            vmem_limit_bytes=vmem_limit_bytes),
        cost_estimate=pl.CostEstimate(
            flops=flops, transcendentals=0, bytes_accessed=bytes_accessed),
    )(x_bf, w1, b1, w2, b2, w3, b3)

    return out[:B] if b_pad != B else out


def init_params(key, input_dim, hidden_sizes, num_classes):
    """Deterministic synthetic init (Kaiming-uniform-ish scale like nn.Linear)."""
    dims = [input_dim] + list(hidden_sizes) + [num_classes]
    params = {}
    for i, (d_in, d_out) in enumerate(zip(dims[:-1], dims[1:]), start=1):
        key, kw, kb = jax.random.split(key, 3)
        bound = 1.0 / jnp.sqrt(d_in)
        params[f"w{i}"] = jax.random.uniform(
            kw, (d_in, d_out), jnp.float32, minval=-bound, maxval=bound)
        params[f"b{i}"] = jax.random.uniform(
            kb, (1, d_out), jnp.float32, minval=-bound, maxval=bound)
    return params


if __name__ == "__main__":
    # Small deterministic example consistent with the module:
    # input_dim=32 features -> hidden [512, 256] -> num_classes=4, batch=8.
    key = jax.random.PRNGKey(0)
    kx, kp = jax.random.split(key)

    batch, input_dim, num_classes = 8, 32, 4
    hidden_sizes = [512, 256]  # Config.HIDDEN_SIZES

    x = jax.random.normal(kx, (batch, input_dim), dtype=jnp.float32)
    params = init_params(kp, input_dim, hidden_sizes, num_classes)
    prep = prepare_params(params)          # one-time; reuse across forward calls

    # tile_b clamps to the batch here (8 rows, single grid step, zero waste).
    # Production: fcnn_forward(x, prep, tile_b=2048..4096, vmem_limit_bytes=...).
    logits = fcnn_forward(x, prep)
    jax.block_until_ready(logits)
    assert logits.shape == (batch, num_classes)

    # Reference 1: same numerics as the kernel (bf16 matmul operands, f32 accumulate).
    def ref_bf16(x, p):
        h = jnp.maximum(
            jnp.dot(x.astype(jnp.bfloat16), p["w1"].astype(jnp.bfloat16),
                    preferred_element_type=jnp.float32) + p["b1"], 0.0)
        h = jnp.maximum(
            jnp.dot(h.astype(jnp.bfloat16), p["w2"].astype(jnp.bfloat16),
                    preferred_element_type=jnp.float32) + p["b2"], 0.0)
        return jnp.dot(h.astype(jnp.bfloat16), p["w3"].astype(jnp.bfloat16),
                       preferred_element_type=jnp.float32) + p["b3"]

    ref_b = ref_bf16(x, params)
    assert jnp.allclose(logits, ref_b, atol=2e-3, rtol=2e-3)

    # Reference 2: plain f32 eval-mode forward (dropout == identity), loose tol
    # to absorb bf16 operand rounding.
    h = jnp.maximum(x @ params["w1"] + params["b1"], 0.0)
    h = jnp.maximum(h @ params["w2"] + params["b2"], 0.0)
    ref_f32 = h @ params["w3"] + params["b3"]
    assert jnp.allclose(logits, ref_f32, atol=5e-2, rtol=5e-2)

    # TODO(synk): training-mode Dropout (p=0.3) would need pltpu.prng_seed /
    # pltpu.prng_random_bits; only eval-mode (identity) is implemented.
    print("KERNEL_OK")
</pallas_src>

<mosaic_0001>
module attributes {stable_mosaic.version = 11 : i64} {
  func.func @mlp_kernel(%arg0: i32, %arg1: memref<8x32xbf16, #tpu.memory_space<vmem>>, %arg2: memref<32x512xbf16, #tpu.memory_space<vmem>>, %arg3: memref<1x512xf32, #tpu.memory_space<vmem>>, %arg4: memref<512x256xbf16, #tpu.memory_space<vmem>>, %arg5: memref<1x256xf32, #tpu.memory_space<vmem>>, %arg6: memref<256x128xbf16, #tpu.memory_space<vmem>>, %arg7: memref<1x4xf32, #tpu.memory_space<vmem>>, %arg8: memref<8x4xf32, #tpu.memory_space<vmem>>) attributes {dimension_semantics = [#tpu.dimension_semantics<parallel>], iteration_bounds = array<i64: 1>, scalar_prefetch = 0 : i64, scratch_operands = 0 : i64, tpu.core_type = #tpu.core_type<tc>, window_params = [{transform_indices = @transform_0, window_bounds = array<i64: 8, 32>}, {pipeline_mode = #tpu.pipeline_mode<synchronous>, transform_indices = @transform_1, window_bounds = array<i64: 32, 512>}, {pipeline_mode = #tpu.pipeline_mode<synchronous>, transform_indices = @transform_2, window_bounds = array<i64: 1, 512>}, {pipeline_mode = #tpu.pipeline_mode<synchronous>, transform_indices = @transform_3, window_bounds = array<i64: 512, 256>}, {pipeline_mode = #tpu.pipeline_mode<synchronous>, transform_indices = @transform_4, window_bounds = array<i64: 1, 256>}, {pipeline_mode = #tpu.pipeline_mode<synchronous>, transform_indices = @transform_5, window_bounds = array<i64: 256, 128>}, {pipeline_mode = #tpu.pipeline_mode<synchronous>, transform_indices = @transform_6, window_bounds = array<i64: 1, 4>}, {transform_indices = @transform_7, window_bounds = array<i64: 8, 4>}]} {
    %c0 = arith.constant 0 : index
    %c0_0 = arith.constant 0 : index
    %0 = vector.load %arg1[%c0, %c0_0] : memref<8x32xbf16, #tpu.memory_space<vmem>>, vector<8x32xbf16>
    %c0_1 = arith.constant 0 : index
    %c0_2 = arith.constant 0 : index
    %1 = vector.load %arg2[%c0_1, %c0_2] : memref<32x512xbf16, #tpu.memory_space<vmem>>, vector<32x512xbf16>
    %cst = arith.constant dense<0.000000e+00> : vector<8x512xf32>
    %2 = tpu.matmul %0, %1, %cst {dimension_numbers = #tpu.dot_dimension_numbers<[1], [0], [0], [1], [0, 0, 1, 1], [], []>} : vector<8x32xbf16>, vector<32x512xbf16>, vector<8x512xf32> -> vector<8x512xf32>
    %c0_3 = arith.constant 0 : index
    %c0_4 = arith.constant 0 : index
    %3 = vector.load %arg3[%c0_3, %c0_4] : memref<1x512xf32, #tpu.memory_space<vmem>>, vector<1x512xf32>
    %4 = vector.broadcast %3 : vector<1x512xf32> to vector<8x512xf32>
    %5 = arith.addf %2, %4 : vector<8x512xf32>
    %cst_5 = arith.constant 0.000000e+00 : f32
    %6 = vector.broadcast %cst_5 : f32 to vector<8x512xf32>
    %7 = arith.maximumf %5, %6 : vector<8x512xf32>
    %8 = arith.truncf %7 : vector<8x512xf32> to vector<8x512xbf16>
    %c0_6 = arith.constant 0 : index
    %c0_7 = arith.constant 0 : index
    %9 = vector.load %arg4[%c0_6, %c0_7] : memref<512x256xbf16, #tpu.memory_space<vmem>>, vector<512x256xbf16>
    %cst_8 = arith.constant dense<0.000000e+00> : vector<8x256xf32>
    %10 = tpu.matmul %8, %9, %cst_8 {dimension_numbers = #tpu.dot_dimension_numbers<[1], [0], [0], [1], [0, 0, 1, 1], [], []>} : vector<8x512xbf16>, vector<512x256xbf16>, vector<8x256xf32> -> vector<8x256xf32>
    %c0_9 = arith.constant 0 : index
    %c0_10 = arith.constant 0 : index
    %11 = vector.load %arg5[%c0_9, %c0_10] : memref<1x256xf32, #tpu.memory_space<vmem>>, vector<1x256xf32>
    %12 = vector.broadcast %11 : vector<1x256xf32> to vector<8x256xf32>
    %13 = arith.addf %10, %12 : vector<8x256xf32>
    %cst_11 = arith.constant 0.000000e+00 : f32
    %14 = vector.broadcast %cst_11 : f32 to vector<8x256xf32>
    %15 = arith.maximumf %13, %14 : vector<8x256xf32>
    %16 = arith.truncf %15 : vector<8x256xf32> to vector<8x256xbf16>
    %c0_12 = arith.constant 0 : index
    %c0_13 = arith.constant 0 : index
    %17 = vector.load %arg6[%c0_12, %c0_13] : memref<256x128xbf16, #tpu.memory_space<vmem>>, vector<256x128xbf16>
    %cst_14 = arith.constant dense<0.000000e+00> : vector<8x128xf32>
    %18 = tpu.matmul %16, %17, %cst_14 {dimension_numbers = #tpu.dot_dimension_numbers<[1], [0], [0], [1], [0, 0, 1, 1], [], []>} : vector<8x256xbf16>, vector<256x128xbf16>, vector<8x128xf32> -> vector<8x128xf32>
    %19 = vector.extract_strided_slice %18 {offsets = [0, 0], sizes = [8, 4], strides = [1, 1]} : vector<8x128xf32> to vector<8x4xf32>
    %c0_15 = arith.constant 0 : index
    %c0_16 = arith.constant 0 : index
    %20 = vector.load %arg7[%c0_15, %c0_16] : memref<1x4xf32, #tpu.memory_space<vmem>>, vector<1x4xf32>
    %21 = vector.broadcast %20 : vector<1x4xf32> to vector<8x4xf32>
    %22 = arith.addf %19, %21 : vector<8x4xf32>
    %c0_17 = arith.constant 0 : index
    %c0_18 = arith.constant 0 : index
    %23 = vector.load %arg8[%c0_17, %c0_18] : memref<8x4xf32, #tpu.memory_space<vmem>>, vector<8x4xf32>
    tpu.vector_store %arg8[%c0_17, %c0_18], %22 {strides = array<i32>} : memref<8x4xf32, #tpu.memory_space<vmem>>, vector<8x4xf32>,
    return
  }
  func.func @transform_0(%arg0: i32) -> (i32, i32) {
    %c0_i32 = arith.constant 0 : i32
    %c0_i32_0 = arith.constant 0 : i32
    return %arg0, %c0_i32 : i32, i32
  }
  func.func @transform_1(%arg0: i32) -> (i32, i32) {
    %c0_i32 = arith.constant 0 : i32
    %c0_i32_0 = arith.constant 0 : i32
    %c0_i32_1 = arith.constant 0 : i32
    return %c0_i32, %c0_i32_0 : i32, i32
  }
  func.func @transform_2(%arg0: i32) -> (i32, i32) {
    %c0_i32 = arith.constant 0 : i32
    %c0_i32_0 = arith.constant 0 : i32
    %c0_i32_1 = arith.constant 0 : i32
    return %c0_i32, %c0_i32_0 : i32, i32
  }
  func.func @transform_3(%arg0: i32) -> (i32, i32) {
    %c0_i32 = arith.constant 0 : i32
    %c0_i32_0 = arith.constant 0 : i32
    %c0_i32_1 = arith.constant 0 : i32
    return %c0_i32, %c0_i32_0 : i32, i32
  }
  func.func @transform_4(%arg0: i32) -> (i32, i32) {
    %c0_i32 = arith.constant 0 : i32
    %c0_i32_0 = arith.constant 0 : i32
    %c0_i32_1 = arith.constant 0 : i32
    return %c0_i32, %c0_i32_0 : i32, i32
  }
  func.func @transform_5(%arg0: i32) -> (i32, i32) {
    %c0_i32 = arith.constant 0 : i32
    %c0_i32_0 = arith.constant 0 : i32
    %c0_i32_1 = arith.constant 0 : i32
    return %c0_i32, %c0_i32_0 : i32, i32
  }
  func.func @transform_6(%arg0: i32) -> (i32, i32) {
    %c0_i32 = arith.constant 0 : i32
    %c0_i32_0 = arith.constant 0 : i32
    %c0_i32_1 = arith.constant 0 : i32
    return %c0_i32, %c0_i32_0 : i32, i32
  }
  func.func @transform_7(%arg0: i32) -> (i32, i32) {
    %c0_i32 = arith.constant 0 : i32
    %c0_i32_0 = arith.constant 0 : i32
    return %arg0, %c0_i32 : i32, i32
  }
}

</mosaic_0001>

<llo_original>
// kernel: tpu_custom_call.1
$region0: #{tpu_custom_call.1}
  #allocation0 [shape = 'u32[]', space=smem, size = 0x4, offset = 0x4, fixed_abs, tag = 'smem constant byte address 0x4 - core index']
  #allocation1 [shape = 'u32[144,128]{1,0:T(1,128)}', space=vmem, size = 0x12000, scoped, tag = 'internal scratch']
  %s0 = inlined_call_operand.hbm [shape: bf16[8,32], index: 0, kind: input, shape index: {}]
  %s1 = inlined_call_operand.hbm [shape: bf16[32,512], index: 1, kind: input, shape index: {}]
  %s2 = inlined_call_operand.vmem [shape: f32[1,512], index: 2, kind: input, shape index: {}]
  %s3 = inlined_call_operand.hbm [shape: bf16[512,256], index: 3, kind: input, shape index: {}]
  %s4 = inlined_call_operand.vmem [shape: f32[1,256], index: 4, kind: input, shape index: {}]
  %s5 = inlined_call_operand.hbm [shape: bf16[256,128], index: 5, kind: input, shape index: {}]
  %s6 = inlined_call_operand.vmem [shape: f32[1,4], index: 6, kind: input, shape index: {}]
  %s7 = inlined_call_operand.vmem [shape: f32[8,4], index: 7, kind: output, shape index: {}]
  %s8 = sld [smem:[#allocation0]]
  $region54: #{tpu_custom_call.1} parent=0
    _
  %s10 = ssub.s32 1, %s8
  %s11 = scalar_select 0, %s10, %s8
  $region1: #{tpu_custom_call.1} parent=0
    #allocation2 [shape = 'u8[2048]{0}', space=vmem, size = 0x800, scoped, tag = 'input window, operand 0, single buffered']
    #allocation3 [shape = 's32[1]{0}', space=sflag, size = 0x4, scoped, tag = 'scoped memory for tpu_custom_call.1']
    #allocation4 [shape = 'u8[32768]{0}', space=vmem, size = 0x8000, scoped, tag = 'input window, operand 1, single buffered']
    #allocation5 [shape = 's32[1]{0}', space=sflag, size = 0x4, scoped, tag = 'scoped memory for tpu_custom_call.1']
    #allocation6 [shape = 'u8[262144]{0}', space=vmem, size = 0x40000, scoped, tag = 'input window, operand 3, single buffered']
    #allocation7 [shape = 'u8[65536]{0}', space=vmem, size = 0x10000, scoped, tag = 'input window, operand 5, single buffered']
    #allocation8 [shape = 's32[1]{0}', space=sflag, size = 0x4, scoped, tag = 'scoped memory for tpu_custom_call.1']
    %12 = vsyncpa [#allocation3], 0
    %13 = vsyncpa [#allocation5], 0
    %14 = vsyncpa [#allocation8], 0
    // Predicated region
    $region2: #{tpu_custom_call.1} parent=1 // pred_check
      _
    $region3: #{tpu_custom_call.1} parent=1 // pred_check_branch
      %16 = sbr.rel (0) target = $region5
    $region4: #{tpu_custom_call.1} parent=1 // pred_region
      %s18 = ssub.s32 64, 64
      %19 = vsyncadd [#allocation3], %s18
      %s21 = sshll.u32 [#allocation2], 4
      %s22 = int_to_ptr.vmem [resolvable:$true] %s21
      %24 = dma.hbm_to_vmem [thread:$0]  %s0, 64, %s22, [#allocation3]
    $region5: #{tpu_custom_call.1} parent=1 // pred_fallthru
      _
    // Predicated region
    $region6: #{tpu_custom_call.1} parent=1 // pred_check
      _
    $region7: #{tpu_custom_call.1} parent=1 // pred_check_branch
      %26 = sbr.rel (0) target = $region9
    $region8: #{tpu_custom_call.1} parent=1 // pred_region
      %s28 = ssub.s32 1024, 1024
      %29 = vsyncadd [#allocation5], %s28
      %s30 = sshll.u32 [#allocation4], 4
      %s31 = int_to_ptr.vmem [resolvable:$true] %s30
      %36 = dma.hbm_to_vmem [thread:$0]  %s1, 1024, %s31, [#allocation5], 256, 256, 16
    $region9: #{tpu_custom_call.1} parent=1 // pred_fallthru
      _
    // Predicated region
    $region10: #{tpu_custom_call.1} parent=1 // pred_check
      _
    $region11: #{tpu_custom_call.1} parent=1 // pred_check_branch
      %38 = sbr.rel (0) target = $region13
    $region12: #{tpu_custom_call.1} parent=1 // pred_region
      _
    $region13: #{tpu_custom_call.1} parent=1 // pred_fallthru
      _
    // Predicated region
    $region14: #{tpu_custom_call.1} parent=1 // pred_check
      _
    $region15: #{tpu_custom_call.1} parent=1 // pred_check_branch
      %40 = sbr.rel (0) target = $region17
    $region16: #{tpu_custom_call.1} parent=1 // pred_region
      %s42 = ssub.s32 8192, 8192
      %43 = vsyncadd [#allocation5], %s42
      %s44 = sshll.u32 [#allocation6], 4
      %s45 = int_to_ptr.vmem [resolvable:$true] %s44
      %50 = dma.hbm_to_vmem [thread:$0]  %s3, 8192, %s45, [#allocation5], 128, 128, 8
    $region17: #{tpu_custom_call.1} parent=1 // pred_fallthru
      _
    // Predicated region
    $region18: #{tpu_custom_call.1} parent=1 // pred_check
      _
    $region19: #{tpu_custom_call.1} parent=1 // pred_check_branch
      %52 = sbr.rel (0) target = $region21
    $region20: #{tpu_custom_call.1} parent=1 // pred_region
      _
    $region21: #{tpu_custom_call.1} parent=1 // pred_fallthru
      _
    // Predicated region
    $region22: #{tpu_custom_call.1} parent=1 // pred_check
      _
    $region23: #{tpu_custom_call.1} parent=1 // pred_check_branch
      %54 = sbr.rel (0) target = $region25
    $region24: #{tpu_custom_call.1} parent=1 // pred_region
      %s56 = ssub.s32 2048, 2048
      %57 = vsyncadd [#allocation8], %s56
      %s58 = sshll.u32 [#allocation7], 4
      %s59 = int_to_ptr.vmem [resolvable:$true] %s58
      %64 = dma.hbm_to_vmem [thread:$0]  %s5, 2048, %s59, [#allocation8], 64, 64, 4
    $region25: #{tpu_custom_call.1} parent=1 // pred_fallthru
      _
    // Predicated region
    $region26: #{tpu_custom_call.1} parent=1 // pred_check
      _
    $region27: #{tpu_custom_call.1} parent=1 // pred_check_branch
      %66 = sbr.rel (0) target = $region29
    $region28: #{tpu_custom_call.1} parent=1 // pred_region
      _
    $region29: #{tpu_custom_call.1} parent=1 // pred_fallthru
      _
    // Predicated region
    $region30: #{tpu_custom_call.1} parent=1 // pred_check
      _
    $region31: #{tpu_custom_call.1} parent=1 // pred_check_branch
      %68 = sbr.rel (0) target = $region33
    $region32: #{tpu_custom_call.1} parent=1 // pred_region
      %69 = dma.done [#allocation3], 64
    $region33: #{tpu_custom_call.1} parent=1 // pred_fallthru
      _
    // Predicated region
    $region34: #{tpu_custom_call.1} parent=1 // pred_check
      _
    $region35: #{tpu_custom_call.1} parent=1 // pred_check_branch
      %71 = sbr.rel (0) target = $region37
    $region36: #{tpu_custom_call.1} parent=1 // pred_region
      %72 = dma.done [#allocation5], 1024
    $region37: #{tpu_custom_call.1} parent=1 // pred_fallthru
      _
    // Predicated region
    $region38: #{tpu_custom_call.1} parent=1 // pred_check
      _
    $region39: #{tpu_custom_call.1} parent=1 // pred_check_branch
      %74 = sbr.rel (0) target = $region41
    $region40: #{tpu_custom_call.1} parent=1 // pred_region
      %75 = dma.done [#allocation5], 8192
    $region41: #{tpu_custom_call.1} parent=1 // pred_fallthru
      _
    // Predicated region
    $region42: #{tpu_custom_call.1} parent=1 // pred_check
      _
    $region43: #{tpu_custom_call.1} parent=1 // pred_check_branch
      %77 = sbr.rel (0) target = $region45
    $region44: #{tpu_custom_call.1} parent=1 // pred_region
      %78 = dma.done [#allocation8], 2048
    $region45: #{tpu_custom_call.1} parent=1 // pred_fallthru
      _
    %v80 = vld [vmem:[#allocation2] sm:$0xf]
    %v81 = vld [vmem:[#allocation4] sm:$0xff]
    %v82 = vld [vmem:[#allocation4 + $0x8] sm:$0xff]
    %v83 = vld [vmem:[#allocation4 + $0x10] sm:$0xff]
    %v84 = vld [vmem:[#allocation4 + $0x18] sm:$0xff]
    %v85 = vld [vmem:[#allocation4 + $0x20] sm:$0xff]
    %v86 = vld [vmem:[#allocation4 + $0x28] sm:$0xff]
    %v87 = vld [vmem:[#allocation4 + $0x30] sm:$0xff]
    %v88 = vld [vmem:[#allocation4 + $0x38] sm:$0xff]
    %v89 = vld [vmem:[%s2] sm:$0xf]
    %v91 = vlaneseq
    %v92 = vshrl.u32 %v91, 7
    %v93 = vsub.s32 0, %v92
    %v94 = vrot.slane %v89, %v93
    %v95 = vlaneseq
    %v96 = vshrl.u32 %v95, 7
    %v97 = vsub.s32 1, %v96
    %v98 = vrot.slane %v89, %v97
    %v99 = vlaneseq
    %v100 = vshrl.u32 %v99, 7
    %v101 = vsub.s32 2, %v100
    %v102 = vrot.slane %v89, %v101
    %v103 = vlaneseq
    %v104 = vshrl.u32 %v103, 7
    %v105 = vsub.s32 3, %v104
    %v106 = vrot.slane %v89, %v105
    %v119 = vunpack.c.l.b16 %v81
    %v120 = vunpack.c.h.b16 %v81
    %v121 = vunpack.c.l.b16 %v82
    %v122 = vunpack.c.h.b16 %v82
    %v123 = vunpack.c.l.b16 %v83
    %v124 = vunpack.c.h.b16 %v83
    %v125 = vunpack.c.l.b16 %v84
    %v126 = vunpack.c.h.b16 %v84
    %v127 = vunpack.c.l.b16 %v85
    %v128 = vunpack.c.h.b16 %v85
    %v129 = vunpack.c.l.b16 %v86
    %v130 = vunpack.c.h.b16 %v86
    %v131 = vunpack.c.l.b16 %v87
    %v132 = vunpack.c.h.b16 %v87
    %v133 = vunpack.c.l.b16 %v88
    %v134 = vunpack.c.h.b16 %v88
    %v135 = vpack.c.b16 %v123, %v119
    %v136 = vpack.c.b16 %v124, %v120
    %v137 = vpack.c.b16 %v125, %v121
    %v138 = vpack.c.b16 %v126, %v122
    %v139 = vpack.c.b16 %v131, %v127
    %v140 = vpack.c.b16 %v132, %v128
    %v141 = vpack.c.b16 %v133, %v129
    %v142 = vpack.c.b16 %v134, %v130
    %vm151 = vcmask 261120
    %v153 = vsel %vm151, %v80, 0
    %155 = vmatprep.subr.bf16.mxu0 %v136
    %156 = vmatpush1.bf16.msra.mxu0 %v135
    %157 = vmatprep.subr.bf16.mxu0 %v140
    %158 = vmatpush1.bf16.msra.mxu0 %v139
    %159 = vmatprep.subr.bf16.mxu0 0
    %160 = vmatpush1.bf16.msra.mxu0 0
    %161 = vmatprep.subr.bf16.mxu0 0
    %162 = vmatpush1.bf16.msra.mxu0 0
    %163 = vmatprep.subr.bf16.mxu0 0
    %164 = vmatpush1.bf16.msra.mxu0 0
    %165 = vmatprep.subr.bf16.mxu0 0
    %166 = vmatpush1.bf16.msra.mxu0 0
    %167 = vmatprep.subr.bf16.mxu0 0
    %168 = vmatpush1.bf16.msra.mxu0 0
    %169 = vmatprep.subr.bf16.mxu0 0
    %170 = vmatpush1.bf16.msra.mxu0 0
    %171 = vmatprep.subr.bf16.mxu0 0
    %172 = vmatpush1.bf16.msra.mxu0 0
    %173 = vmatprep.subr.bf16.mxu0 0
    %174 = vmatpush1.bf16.msra.mxu0 0
    %175 = vmatprep.subr.bf16.mxu0 0
    %176 = vmatpush1.bf16.msra.mxu0 0
    %177 = vmatprep.subr.bf16.mxu0 0
    %178 = vmatpush1.bf16.msra.mxu0 0
    %179 = vmatprep.subr.bf16.mxu0 0
    %180 = vmatpush1.bf16.msra.mxu0 0
    %181 = vmatprep.subr.bf16.mxu0 0
    %182 = vmatpush1.bf16.msra.mxu0 0
    %183 = vmatprep.subr.bf16.mxu0 0
    %184 = vmatpush1.bf16.msra.mxu0 0
    %185 = vmatprep.subr.bf16.mxu0 0
    %186 = vmatpush1.bf16.msra.mxu0 0
    %187 = vmatprep.mubr.bf16.mxu0 0
    %188 = vmatmul.mubr.bf16.gmra.mrb[0].mxu0 %v153
    %v189 = vpop.f32.mrb[0].mxu0
    %v190 = vadd.f32 %v94, %v189
    %v191 = vpop.f32.mrb[0].mxu0
    %v192 = vadd.f32 %v98, %v191
    %v193 = vpop.f32.mrb[0].mxu0
    %v194 = vpop.f32.mrb[0].mxu0
    %195 = vdwg.mxu0
    %196 = vmatprep.subr.bf16.mxu0 %v138
    %197 = vmatpush1.bf16.msra.mxu0 %v137
    %198 = vmatprep.subr.bf16.mxu0 %v142
    %199 = vmatpush1.bf16.msra.mxu0 %v141
    %200 = vmatprep.subr.bf16.mxu0 0
    %201 = vmatpush1.bf16.msra.mxu0 0
    %202 = vmatprep.subr.bf16.mxu0 0
    %203 = vmatpush1.bf16.msra.mxu0 0
    %204 = vmatprep.subr.bf16.mxu0 0
    %205 = vmatpush1.bf16.msra.mxu0 0
    %206 = vmatprep.subr.bf16.mxu0 0
    %207 = vmatpush1.bf16.msra.mxu0 0
    %208 = vmatprep.subr.bf16.mxu0 0
    %209 = vmatpush1.bf16.msra.mxu0 0
    %210 = vmatprep.subr.bf16.mxu0 0
    %211 = vmatpush1.bf16.msra.mxu0 0
    %212 = vmatprep.subr.bf16.mxu0 0
    %213 = vmatpush1.bf16.msra.mxu0 0
    %214 = vmatprep.subr.bf16.mxu0 0
    %215 = vmatpush1.bf16.msra.mxu0 0
    %216 = vmatprep.subr.bf16.mxu0 0
    %217 = vmatpush1.bf16.msra.mxu0 0
    %218 = vmatprep.subr.bf16.mxu0 0
    %219 = vmatpush1.bf16.msra.mxu0 0
    %220 = vmatprep.subr.bf16.mxu0 0
    %221 = vmatpush1.bf16.msra.mxu0 0
    %222 = vmatprep.subr.bf16.mxu0 0
    %223 = vmatpush1.bf16.msra.mxu0 0
    %224 = vmatprep.subr.bf16.mxu0 0
    %225 = vmatpush1.bf16.msra.mxu0 0
    %226 = vmatprep.subr.bf16.mxu0 0
    %227 = vmatpush1.bf16.msra.mxu0 0
    %228 = vmatprep.mubr.bf16.mxu0 0
    %229 = vmatmul.mubr.bf16.gmra.mrb[0].mxu0 %v153
    %v230 = vpop.f32.mrb[0].mxu0
    %v231 = vadd.f32 %v102, %v230
    %v232 = vpop.f32.mrb[0].mxu0
    %v233 = vadd.f32 %v106, %v232
    %v234 = vpop.f32.mrb[0].mxu0
    %v235 = vpop.f32.mrb[0].mxu0
    %236 = vdwg.mxu0
    %v237 = vmax.f32 %v190, 0.0
    %v238 = vmax.f32 %v192, 0.0
    %v239 = vmax.f32 %v231, 0.0
    %v240 = vmax.f32 %v233, 0.0
    %v241 = vpack.c.bf16 %v237, %v237
    %v242 = vpack.c.bf16 %v238, %v238
    %v243 = vpack.c.bf16 %v239, %v239
    %v244 = vpack.c.bf16 %v240, %v240
    %v245 = vld [vmem:[#allocation6] sm:$0xff]
    %v246 = vld [vmem:[#allocation6 + $0x8] sm:$0xff]
    %v247 = vld [vmem:[#allocation6 + $0x10] sm:$0xff]
    %v248 = vld [vmem:[#allocation6 + $0x18] sm:$0xff]
    %v249 = vld [vmem:[#allocation6 + $0x20] sm:$0xff]
    %v250 = vld [vmem:[#allocation6 + $0x28] sm:$0xff]
    %v251 = vld [vmem:[#allocation6 + $0x30] sm:$0xff]
    %v252 = vld [vmem:[#allocation6 + $0x38] sm:$0xff]
    %v253 = vld [vmem:[#allocation6 + $0x40] sm:$0xff]
    %v254 = vld [vmem:[#allocation6 + $0x48] sm:$0xff]
    %v255 = vld [vmem:[#allocation6 + $0x50] sm:$0xff]
    %v256 = vld [vmem:[#allocation6 + $0x58] sm:$0xff]
    %v257 = vld [vmem:[#allocation6 + $0x60] sm:$0xff]
    %v258 = vld [vmem:[#allocation6 + $0x68] sm:$0xff]
    %v259 = vld [vmem:[#allocation6 + $0x70] sm:$0xff]
    %v260 = vld [vmem:[#allocation6 + $0x78] sm:$0xff]
    %v261 = vld [vmem:[#allocation6 + $0x80] sm:$0xff]
    %v262 = vld [vmem:[#allocation6 + $0x88] sm:$0xff]
    %v263 = vld [vmem:[#allocation6 + $0x90] sm:$0xff]
    %v264 = vld [vmem:[#allocation6 + $0x98] sm:$0xff]
    %v265 = vld [vmem:[#allocation6 + $0xa0] sm:$0xff]
    %v266 = vld [vmem:[#allocation6 + $0xa8] sm:$0xff]
    %v267 = vld [vmem:[#allocation6 + $0xb0] sm:$0xff]
    %v268 = vld [vmem:[#allocation6 + $0xb8] sm:$0xff]
    %v269 = vld [vmem:[#allocation6 + $0xc0] sm:$0xff]
    %v270 = vld [vmem:[#allocation6 + $0xc8] sm:$0xff]
    %v271 = vld [vmem:[#allocation6 + $0xd0] sm:$0xff]
    %v272 = vld [vmem:[#allocation6 + $0xd8] sm:$0xff]
    %v273 = vld [vmem:[#allocation6 + $0xe0] sm:$0xff]
    %v274 = vld [vmem:[#allocation6 + $0xe8] sm:$0xff]
    %v275 = vld [vmem:[#allocation6 + $0xf0] sm:$0xff]
    %v276 = vld [vmem:[#allocation6 + $0xf8] sm:$0xff]
    %v277 = vld [vmem:[#allocation6 + $0x100] sm:$0xff]
    %v278 = vld [vmem:[#allocation6 + $0x108] sm:$0xff]
    %v279 = vld [vmem:[#allocation6 + $0x110] sm:$0xff]
    %v280 = vld [vmem:[#allocation6 + $0x118] sm:$0xff]
    %v281 = vld [vmem:[#allocation6 + $0x120] sm:$0xff]
    %v282 = vld [vmem:[#allocation6 + $0x128] sm:$0xff]
    %v283 = vld [vmem:[#allocation6 + $0x130] sm:$0xff]
    %v284 = vld [vmem:[#allocation6 + $0x138] sm:$0xff]
    %v285 = vld [vmem:[#allocation6 + $0x140] sm:$0xff]
    %v286 = vld [vmem:[#allocation6 + $0x148] sm:$0xff]
    %v287 = vld [vmem:[#allocation6 + $0x150] sm:$0xff]
    %v288 = vld [vmem:[#allocation6 + $0x158] sm:$0xff]
    %v289 = vld [vmem:[#allocation6 + $0x160] sm:$0xff]
    %v290 = vld [vmem:[#allocation6 + $0x168] sm:$0xff]
    %v291 = vld [vmem:[#allocation6 + $0x170] sm:$0xff]
    %v292 = vld [vmem:[#allocation6 + $0x178] sm:$0xff]
    %v293 = vld [vmem:[#allocation6 + $0x180] sm:$0xff]
    %v294 = vld [vmem:[#allocation6 + $0x188] sm:$0xff]
    %v295 = vld [vmem:[#allocation6 + $0x190] sm:$0xff]
    %v296 = vld [vmem:[#allocation6 + $0x198] sm:$0xff]
    %v297 = vld [vmem:[#allocation6 + $0x1a0] sm:$0xff]
    %v298 = vld [vmem:[#allocation6 + $0x1a8] sm:$0xff]
    %v299 = vld [vmem:[#allocation6 + $0x1b0] sm:$0xff]
    %v300 = vld [vmem:[#allocation6 + $0x1b8] sm:$0xff]
    %v301 = vld [vmem:[#allocation6 + $0x1c0] sm:$0xff]
    %v302 = vld [vmem:[#allocation6 + $0x1c8] sm:$0xff]
    %v303 = vld [vmem:[#allocation6 + $0x1d0] sm:$0xff]
    %v304 = vld [vmem:[#allocation6 + $0x1d8] sm:$0xff]
    %v305 = vld [vmem:[#allocation6 + $0x1e0] sm:$0xff]
    %v306 = vld [vmem:[#allocation6 + $0x1e8] sm:$0xff]
    %v307 = vld [vmem:[#allocation6 + $0x1f0] sm:$0xff]
    %v308 = vld [vmem:[#allocation6 + $0x1f8] sm:$0xff]
    %v309 = vld [vmem:[%s4] sm:$0x3]
    %v311 = vlaneseq
    %v312 = vshrl.u32 %v311, 7
    %v313 = vsub.s32 0, %v312
    %v314 = vrot.slane %v309, %v313
    %v315 = vlaneseq
    %v316 = vshrl.u32 %v315, 7
    %v317 = vsub.s32 1, %v316
    %v318 = vrot.slane %v309, %v317
    %v385 = vunpack.c.l.b16 %v245
    %v386 = vunpack.c.h.b16 %v245
    %v387 = vunpack.c.l.b16 %v246
    %v388 = vunpack.c.h.b16 %v246
    %v389 = vunpack.c.l.b16 %v247
    %v390 = vunpack.c.h.b16 %v247
    %v391 = vunpack.c.l.b16 %v248
    %v392 = vunpack.c.h.b16 %v248
    %v393 = vunpack.c.l.b16 %v249
    %v394 = vunpack.c.h.b16 %v249
    %v395 = vunpack.c.l.b16 %v250
    %v396 = vunpack.c.h.b16 %v250
    %v397 = vunpack.c.l.b16 %v251
    %v398 = vunpack.c.h.b16 %v251
    %v399 = vunpack.c.l.b16 %v252
    %v400 = vunpack.c.h.b16 %v252
    %v401 = vunpack.c.l.b16 %v253
    %v402 = vunpack.c.h.b16 %v253
    %v403 = vunpack.c.l.b16 %v254
    %v404 = vunpack.c.h.b16 %v254
    %v405 = vunpack.c.l.b16 %v255
    %v406 = vunpack.c.h.b16 %v255
    %v407 = vunpack.c.l.b16 %v256
    %v408 = vunpack.c.h.b16 %v256
    %v409 = vunpack.c.l.b16 %v257
    %v410 = vunpack.c.h.b16 %v257
    %v411 = vunpack.c.l.b16 %v258
    %v412 = vunpack.c.h.b16 %v258
    %v413 = vunpack.c.l.b16 %v259
    %v414 = vunpack.c.h.b16 %v259
    %v415 = vunpack.c.l.b16 %v260
    %v416 = vunpack.c.h.b16 %v260
    %v417 = vunpack.c.l.b16 %v261
    %v418 = vunpack.c.h.b16 %v261
    %v419 = vunpack.c.l.b16 %v262
    %v420 = vunpack.c.h.b16 %v262
    %v421 = vunpack.c.l.b16 %v263
    %v422 = vunpack.c.h.b16 %v263
    %v423 = vunpack.c.l.b16 %v264
    %v424 = vunpack.c.h.b16 %v264
    %v425 = vunpack.c.l.b16 %v265
    %v426 = vunpack.c.h.b16 %v265
    %v427 = vunpack.c.l.b16 %v266
    %v428 = vunpack.c.h.b16 %v266
    %v429 = vunpack.c.l.b16 %v267
    %v430 = vunpack.c.h.b16 %v267
    %v431 = vunpack.c.l.b16 %v268
    %v432 = vunpack.c.h.b16 %v268
    %v433 = vunpack.c.l.b16 %v269
    %v434 = vunpack.c.h.b16 %v269
    %v435 = vunpack.c.l.b16 %v270
    %v436 = vunpack.c.h.b16 %v270
    %v437 = vunpack.c.l.b16 %v271
    %v438 = vunpack.c.h.b16 %v271
    %v439 = vunpack.c.l.b16 %v272
    %v440 = vunpack.c.h.b16 %v272
    %v441 = vunpack.c.l.b16 %v273
    %v442 = vunpack.c.h.b16 %v273
    %v443 = vunpack.c.l.b16 %v274
    %v444 = vunpack.c.h.b16 %v274
    %v445 = vunpack.c.l.b16 %v275
    %v446 = vunpack.c.h.b16 %v275
    %v447 = vunpack.c.l.b16 %v276
    %v448 = vunpack.c.h.b16 %v276
    %v449 = vunpack.c.l.b16 %v277
    %v450 = vunpack.c.h.b16 %v277
    %v451 = vunpack.c.l.b16 %v278
    %v452 = vunpack.c.h.b16 %v278
    %v453 = vunpack.c.l.b16 %v279
    %v454 = vunpack.c.h.b16 %v279
    %v455 = vunpack.c.l.b16 %v280
    %v456 = vunpack.c.h.b16 %v280
    %v457 = vunpack.c.l.b16 %v281
    %v458 = vunpack.c.h.b16 %v281
    %v459 = vunpack.c.l.b16 %v282
    %v460 = vunpack.c.h.b16 %v282
    %v461 = vunpack.c.l.b16 %v283
    %v462 = vunpack.c.h.b16 %v283
    %v463 = vunpack.c.l.b16 %v284
    %v464 = vunpack.c.h.b16 %v284
    %v465 = vunpack.c.l.b16 %v285
    %v466 = vunpack.c.h.b16 %v285
    %v467 = vunpack.c.l.b16 %v286
    %v468 = vunpack.c.h.b16 %v286
    %v469 = vunpack.c.l.b16 %v287
    %v470 = vunpack.c.h.b16 %v287
    %v471 = vunpack.c.l.b16 %v288
    %v472 = vunpack.c.h.b16 %v288
    %v473 = vunpack.c.l.b16 %v289
    %v474 = vunpack.c.h.b16 %v289
    %v475 = vunpack.c.l.b16 %v290
    %v476 = vunpack.c.h.b16 %v290
    %v477 = vunpack.c.l.b16 %v291
    %v478 = vunpack.c.h.b16 %v291
    %v479 = vunpack.c.l.b16 %v292
    %v480 = vunpack.c.h.b16 %v292
    %v481 = vunpack.c.l.b16 %v293
    %v482 = vunpack.c.h.b16 %v293
    %v483 = vunpack.c.l.b16 %v294
    %v484 = vunpack.c.h.b16 %v294
    %v485 = vunpack.c.l.b16 %v295
    %v486 = vunpack.c.h.b16 %v295
    %v487 = vunpack.c.l.b16 %v296
    %v488 = vunpack.c.h.b16 %v296
    %v489 = vunpack.c.l.b16 %v297
    %v490 = vunpack.c.h.b16 %v297
    %v491 = vunpack.c.l.b16 %v298
    %v492 = vunpack.c.h.b16 %v298
    %v493 = vunpack.c.l.b16 %v299
    %v494 = vunpack.c.h.b16 %v299
    %v495 = vunpack.c.l.b16 %v300
    %v496 = vunpack.c.h.b16 %v300
    %v497 = vunpack.c.l.b16 %v301
    %v498 = vunpack.c.h.b16 %v301
    %v499 = vunpack.c.l.b16 %v302
    %v500 = vunpack.c.h.b16 %v302
    %v501 = vunpack.c.l.b16 %v303
    %v502 = vunpack.c.h.b16 %v303
    %v503 = vunpack.c.l.b16 %v304
    %v504 = vunpack.c.h.b16 %v304
    %v505 = vunpack.c.l.b16 %v305
    %v506 = vunpack.c.h.b16 %v305
    %v507 = vunpack.c.l.b16 %v306
    %v508 = vunpack.c.h.b16 %v306
    %v509 = vunpack.c.l.b16 %v307
    %v510 = vunpack.c.h.b16 %v307
    %v511 = vunpack.c.l.b16 %v308
    %v512 = vunpack.c.h.b16 %v308
    %v513 = vpack.c.b16 %v387, %v385
    %v514 = vpack.c.b16 %v388, %v386
    %v515 = vpack.c.b16 %v391, %v389
    %v516 = vpack.c.b16 %v392, %v390
    %v517 = vpack.c.b16 %v395, %v393
    %v518 = vpack.c.b16 %v396, %v394
    %v519 = vpack.c.b16 %v399, %v397
    %v520 = vpack.c.b16 %v400, %v398
    %v521 = vpack.c.b16 %v403, %v401
    %v522 = vpack.c.b16 %v404, %v402
    %v523 = vpack.c.b16 %v407, %v405
    %v524 = vpack.c.b16 %v408, %v406
    %v525 = vpack.c.b16 %v411, %v409
    %v526 = vpack.c.b16 %v412, %v410
    %v527 = vpack.c.b16 %v415, %v413
    %v528 = vpack.c.b16 %v416, %v414
    %v529 = vpack.c.b16 %v419, %v417
    %v530 = vpack.c.b16 %v420, %v418
    %v531 = vpack.c.b16 %v423, %v421
    %v532 = vpack.c.b16 %v424, %v422
    %v533 = vpack.c.b16 %v427, %v425
    %v534 = vpack.c.b16 %v428, %v426
    %v535 = vpack.c.b16 %v431, %v429
    %v536 = vpack.c.b16 %v432, %v430
    %v537 = vpack.c.b16 %v435, %v433
    %v538 = vpack.c.b16 %v436, %v434
    %v539 = vpack.c.b16 %v439, %v437
    %v540 = vpack.c.b16 %v440, %v438
    %v541 = vpack.c.b16 %v443, %v441
    %v542 = vpack.c.b16 %v444, %v442
    %v543 = vpack.c.b16 %v447, %v445
    %v544 = vpack.c.b16 %v448, %v446
    %v545 = vpack.c.b16 %v451, %v449
    %v546 = vpack.c.b16 %v452, %v450
    %v547 = vpack.c.b16 %v455, %v453
    %v548 = vpack.c.b16 %v456, %v454
    %v549 = vpack.c.b16 %v459, %v457
    %v550 = vpack.c.b16 %v460, %v458
    %v551 = vpack.c.b16 %v463, %v461
    %v552 = vpack.c.b16 %v464, %v462
    %v553 = vpack.c.b16 %v467, %v465
    %v554 = vpack.c.b16 %v468, %v466
    %v555 = vpack.c.b16 %v471, %v469
    %v556 = vpack.c.b16 %v472, %v470
    %v557 = vpack.c.b16 %v475, %v473
    %v558 = vpack.c.b16 %v476, %v474
    %v559 = vpack.c.b16 %v479, %v477
    %v560 = vpack.c.b16 %v480, %v478
    %v561 = vpack.c.b16 %v483, %v481
    %v562 = vpack.c.b16 %v484, %v482
    %v563 = vpack.c.b16 %v487, %v485
    %v564 = vpack.c.b16 %v488, %v486
    %v565 = vpack.c.b16 %v491, %v489
    %v566 = vpack.c.b16 %v492, %v490
    %v567 = vpack.c.b16 %v495, %v493
    %v568 = vpack.c.b16 %v496, %v494
    %v569 = vpack.c.b16 %v499, %v497
    %v570 = vpack.c.b16 %v500, %v498
    %v571 = vpack.c.b16 %v503, %v501
    %v572 = vpack.c.b16 %v504, %v502
    %v573 = vpack.c.b16 %v507, %v505
    %v574 = vpack.c.b16 %v508, %v506
    %v575 = vpack.c.b16 %v511, %v509
    %v576 = vpack.c.b16 %v512, %v510
    %641 = vmatprep.subr.bf16.mxu0 %v514
    %642 = vmatpush1.bf16.msra.mxu0 %v513
    %643 = vmatprep.subr.bf16.mxu0 %v516
    %644 = vmatpush1.bf16.msra.mxu0 %v515
    %645 = vmatprep.subr.bf16.mxu0 %v518
    %646 = vmatpush1.bf16.msra.mxu0 %v517
    %647 = vmatprep.subr.bf16.mxu0 %v520
    %648 = vmatpush1.bf16.msra.mxu0 %v519
    %649 = vmatprep.subr.bf16.mxu0 %v522
    %650 = vmatpush1.bf16.msra.mxu0 %v521
    %651 = vmatprep.subr.bf16.mxu0 %v524
    %652 = vmatpush1.bf16.msra.mxu0 %v523
    %653 = vmatprep.subr.bf16.mxu0 %v526
    %654 = vmatpush1.bf16.msra.mxu0 %v525
    %655 = vmatprep.subr.bf16.mxu0 %v528
    %656 = vmatpush1.bf16.msra.mxu0 %v527
    %657 = vmatprep.subr.bf16.mxu0 %v530
    %658 = vmatpush1.bf16.msra.mxu0 %v529
    %659 = vmatprep.subr.bf16.mxu0 %v532
    %660 = vmatpush1.bf16.msra.mxu0 %v531
    %661 = vmatprep.subr.bf16.mxu0 %v534
    %662 = vmatpush1.bf16.msra.mxu0 %v533
    %663 = vmatprep.subr.bf16.mxu0 %v536
    %664 = vmatpush1.bf16.msra.mxu0 %v535
    %665 = vmatprep.subr.bf16.mxu0 %v538
    %666 = vmatpush1.bf16.msra.mxu0 %v537
    %667 = vmatprep.subr.bf16.mxu0 %v540
    %668 = vmatpush1.bf16.msra.mxu0 %v539
    %669 = vmatprep.subr.bf16.mxu0 %v542
    %670 = vmatpush1.bf16.msra.mxu0 %v541
    %671 = vmatprep.subr.bf16.mxu0 %v544
    %672 = vmatpush1.bf16.msra.mxu0 %v543
    %673 = vmatprep.mubr.bf16.mxu0 %v242
    %674 = vmatmul.mubr.bf16.gmra.mrb[0].mxu0 %v241
    %v675 = vpop.f32.mrb[0].mxu0
    %v676 = vadd.f32 %v314, %v675
    %v677 = vpop.f32.mrb[0].mxu0
    %v678 = vadd.f32 %v318, %v677
    %v679 = vpop.f32.mrb[0].mxu0
    %v680 = vpop.f32.mrb[0].mxu0
    %681 = vdwg.mxu0
    %682 = vmatprep.subr.bf16.mxu0 %v546
    %683 = vmatpush1.bf16.msra.mxu0 %v545
    %684 = vmatprep.subr.bf16.mxu0 %v548
    %685 = vmatpush1.bf16.msra.mxu0 %v547
    %686 = vmatprep.subr.bf16.mxu0 %v550
    %687 = vmatpush1.bf16.msra.mxu0 %v549
    %688 = vmatprep.subr.bf16.mxu0 %v552
    %689 = vmatpush1.bf16.msra.mxu0 %v551
    %690 = vmatprep.subr.bf16.mxu0 %v554
    %691 = vmatpush1.bf16.msra.mxu0 %v553
    %692 = vmatprep.subr.bf16.mxu0 %v556
    %693 = vmatpush1.bf16.msra.mxu0 %v555
    %694 = vmatprep.subr.bf16.mxu0 %v558
    %695 = vmatpush1.bf16.msra.mxu0 %v557
    %696 = vmatprep.subr.bf16.mxu0 %v560
    %697 = vmatpush1.bf16.msra.mxu0 %v559
    %698 = vmatprep.subr.bf16.mxu0 %v562
    %699 = vmatpush1.bf16.msra.mxu0 %v561
    %700 = vmatprep.subr.bf16.mxu0 %v564
    %701 = vmatpush1.bf16.msra.mxu0 %v563
    %702 = vmatprep.subr.bf16.mxu0 %v566
    %703 = vmatpush1.bf16.msra.mxu0 %v565
    %704 = vmatprep.subr.bf16.mxu0 %v568
    %705 = vmatpush1.bf16.msra.mxu0 %v567
    %706 = vmatprep.subr.bf16.mxu0 %v570
    %707 = vmatpush1.bf16.msra.mxu0 %v569
    %708 = vmatprep.subr.bf16.mxu0 %v572
    %709 = vmatpush1.bf16.msra.mxu0 %v571
    %710 = vmatprep.subr.bf16.mxu0 %v574
    %711 = vmatpush1.bf16.msra.mxu0 %v573
    %712 = vmatprep.subr.bf16.mxu0 %v576
    %713 = vmatpush1.bf16.msra.mxu0 %v575
    %714 = vmatprep.mubr.bf16.mxu0 %v244
    %715 = vmatmul.mubr.bf16.gmra.mrb[0].mxu0 %v243
    %v716 = vpop.f32.mrb[0].mxu0
    %v717 = vadd.f32 %v676, %v716
    %v718 = vpop.f32.mrb[0].mxu0
    %v719 = vadd.f32 %v678, %v718
    %v720 = vpop.f32.mrb[0].mxu0
    %v721 = vpop.f32.mrb[0].mxu0
    %722 = vdwg.mxu0
    %v723 = vmax.f32 %v717, 0.0
    %v724 = vmax.f32 %v719, 0.0
    %v725 = vpack.c.bf16 %v723, %v723
    %v726 = vpack.c.bf16 %v724, %v724
    %v727 = vld [vmem:[#allocation7] sm:$0xf]
    %v728 = vld [vmem:[#allocation7 + $0x4] sm:$0xf]
    %v729 = vld [vmem:[#allocation7 + $0x8] sm:$0xf]
    %v730 = vld [vmem:[#allocation7 + $0xc] sm:$0xf]
    %v731 = vld [vmem:[#allocation7 + $0x10] sm:$0xf]
    %v732 = vld [vmem:[#allocation7 + $0x14] sm:$0xf]
    %v733 = vld [vmem:[#allocation7 + $0x18] sm:$0xf]
    %v734 = vld [vmem:[#allocation7 + $0x1c] sm:$0xf]
    %v735 = vld [vmem:[#allocation7 + $0x20] sm:$0xf]
    %v736 = vld [vmem:[#allocation7 + $0x24] sm:$0xf]
    %v737 = vld [vmem:[#allocation7 + $0x28] sm:$0xf]
    %v738 = vld [vmem:[#allocation7 + $0x2c] sm:$0xf]
    %v739 = vld [vmem:[#allocation7 + $0x30] sm:$0xf]
    %v740 = vld [vmem:[#allocation7 + $0x34] sm:$0xf]
    %v741 = vld [vmem:[#allocation7 + $0x38] sm:$0xf]
    %v742 = vld [vmem:[#allocation7 + $0x3c] sm:$0xf]
    %v743 = vld [vmem:[#allocation7 + $0x40] sm:$0xf]
    %v744 = vld [vmem:[#allocation7 + $0x44] sm:$0xf]
    %v745 = vld [vmem:[#allocation7 + $0x48] sm:$0xf]
    %v746 = vld [vmem:[#allocation7 + $0x4c] sm:$0xf]
    %v747 = vld [vmem:[#allocation7 + $0x50] sm:$0xf]
    %v748 = vld [vmem:[#allocation7 + $0x54] sm:$0xf]
    %v749 = vld [vmem:[#allocation7 + $0x58] sm:$0xf]
    %v750 = vld [vmem:[#allocation7 + $0x5c] sm:$0xf]
    %v751 = vld [vmem:[#allocation7 + $0x60] sm:$0xf]
    %v752 = vld [vmem:[#allocation7 + $0x64] sm:$0xf]
    %v753 = vld [vmem:[#allocation7 + $0x68] sm:$0xf]
    %v754 = vld [vmem:[#allocation7 + $0x6c] sm:$0xf]
    %v755 = vld [vmem:[#allocation7 + $0x70] sm:$0xf]
    %v756 = vld [vmem:[#allocation7 + $0x74] sm:$0xf]
    %v757 = vld [vmem:[#allocation7 + $0x78] sm:$0xf]
    %v758 = vld [vmem:[#allocation7 + $0x7c] sm:$0xf]
    %v791 = vunpack.c.l.b16 %v727
    %v792 = vunpack.c.l.b16 %v728
    %v793 = vunpack.c.l.b16 %v729
    %v794 = vunpack.c.l.b16 %v730
    %v795 = vunpack.c.l.b16 %v731
    %v796 = vunpack.c.l.b16 %v732
    %v797 = vunpack.c.l.b16 %v733
    %v798 = vunpack.c.l.b16 %v734
    %v799 = vunpack.c.l.b16 %v735
    %v800 = vunpack.c.l.b16 %v736
    %v801 = vunpack.c.l.b16 %v737
    %v802 = vunpack.c.l.b16 %v738
    %v803 = vunpack.c.l.b16 %v739
    %v804 = vunpack.c.l.b16 %v740
    %v805 = vunpack.c.l.b16 %v741
    %v806 = vunpack.c.l.b16 %v742
    %v807 = vunpack.c.l.b16 %v743
    %v808 = vunpack.c.l.b16 %v744
    %v809 = vunpack.c.l.b16 %v745
    %v810 = vunpack.c.l.b16 %v746
    %v811 = vunpack.c.l.b16 %v747
    %v812 = vunpack.c.l.b16 %v748
    %v813 = vunpack.c.l.b16 %v749
    %v814 = vunpack.c.l.b16 %v750
    %v815 = vunpack.c.l.b16 %v751
    %v816 = vunpack.c.l.b16 %v752
    %v817 = vunpack.c.l.b16 %v753
    %v818 = vunpack.c.l.b16 %v754
    %v819 = vunpack.c.l.b16 %v755
    %v820 = vunpack.c.l.b16 %v756
    %v821 = vunpack.c.l.b16 %v757
    %v822 = vunpack.c.l.b16 %v758
    %v823 = vpack.c.b16 %v792, %v791
    %v824 = vpack.c.b16 %v794, %v793
    %v825 = vpack.c.b16 %v796, %v795
    %v826 = vpack.c.b16 %v798, %v797
    %v827 = vpack.c.b16 %v800, %v799
    %v828 = vpack.c.b16 %v802, %v801
    %v829 = vpack.c.b16 %v804, %v803
    %v830 = vpack.c.b16 %v806, %v805
    %v831 = vpack.c.b16 %v808, %v807
    %v832 = vpack.c.b16 %v810, %v809
    %v833 = vpack.c.b16 %v812, %v811
    %v834 = vpack.c.b16 %v814, %v813
    %v835 = vpack.c.b16 %v816, %v815
    %v836 = vpack.c.b16 %v818, %v817
    %v837 = vpack.c.b16 %v820, %v819
    %v838 = vpack.c.b16 %v822, %v821
    %855 = vmatprep.subr.bf16.mxu0 0
    %856 = vmatpush1.bf16.msra.mxu0 %v823
    %857 = vmatprep.subr.bf16.mxu0 0
    %858 = vmatpush1.bf16.msra.mxu0 %v824
    %859 = vmatprep.subr.bf16.mxu0 0
    %860 = vmatpush1.bf16.msra.mxu0 %v825
    %861 = vmatprep.subr.bf16.mxu0 0
    %862 = vmatpush1.bf16.msra.mxu0 %v826
    %863 = vmatprep.subr.bf16.mxu0 0
    %864 = vmatpush1.bf16.msra.mxu0 %v827
    %865 = vmatprep.subr.bf16.mxu0 0
    %866 = vmatpush1.bf16.msra.mxu0 %v828
    %867 = vmatprep.subr.bf16.mxu0 0
    %868 = vmatpush1.bf16.msra.mxu0 %v829
    %869 = vmatprep.subr.bf16.mxu0 0
    %870 = vmatpush1.bf16.msra.mxu0 %v830
    %871 = vmatprep.subr.bf16.mxu0 0
    %872 = vmatpush1.bf16.msra.mxu0 %v831
    %873 = vmatprep.subr.bf16.mxu0 0
    %874 = vmatpush1.bf16.msra.mxu0 %v832
    %875 = vmatprep.subr.bf16.mxu0 0
    %876 = vmatpush1.bf16.msra.mxu0 %v833
    %877 = vmatprep.subr.bf16.mxu0 0
    %878 = vmatpush1.bf16.msra.mxu0 %v834
    %879 = vmatprep.subr.bf16.mxu0 0
    %880 = vmatpush1.bf16.msra.mxu0 %v835
    %881 = vmatprep.subr.bf16.mxu0 0
    %882 = vmatpush1.bf16.msra.mxu0 %v836
    %883 = vmatprep.subr.bf16.mxu0 0
    %884 = vmatpush1.bf16.msra.mxu0 %v837
    %885 = vmatprep.subr.bf16.mxu0 0
    %886 = vmatpush1.bf16.msra.mxu0 %v838
    %887 = vmatprep.mubr.bf16.mxu0 %v726
    %888 = vmatmul.mubr.bf16.gmra.mrb[0].mxu0 %v725
    %v889 = vpop.f32.mrb[0].mxu0
    %v890 = vadd.f32 0.0, %v889
    %v891 = vpop.f32.mrb[0].mxu0
    %v892 = vpop.f32.mrb[0].mxu0
    %v893 = vpop.f32.mrb[0].mxu0
    %894 = vdwg.mxu0
    %v895 = vld [vmem:[%s6] sm:$0x1]
    %v897 = vlaneseq
    %v898 = vshrl.u32 %v897, 7
    %v899 = vsub.s32 0, %v898
    %v900 = vrot.slane %v895, %v899
    %v902 = vadd.f32 %v890, %v900
    %vm903 = vcmask 31744
    %904 = vst.msk [vmem:[%s7] sm:$0xff] %vm903, %v902
    // Predicated region
    $region46: #{tpu_custom_call.1} parent=1 // pred_check
      _
    $region47: #{tpu_custom_call.1} parent=1 // pred_check_branch
      %906 = sbr.rel (0) target = $region49
    $region48: #{tpu_custom_call.1} parent=1 // pred_region
      _
    $region49: #{tpu_custom_call.1} parent=1 // pred_fallthru
      _
    // Predicated region
    $region50: #{tpu_custom_call.1} parent=1 // pred_check
      _
    $region51: #{tpu_custom_call.1} parent=1 // pred_check_branch
      %908 = sbr.rel (0) target = $region53
    $region52: #{tpu_custom_call.1} parent=1 // pred_region
      _
    $region53: #{tpu_custom_call.1} parent=1 // pred_fallthru
      _
    %909 = vsyncpa [#allocation3], 1
    %910 = vsyncpa [#allocation5], 1
    %911 = vsyncpa [#allocation8], 1

</llo_original>
